<compile_context>
chip_gen: v5e
topology: v5e:2x2
jax: 0.10.0
libtpu: 0.0.40
codegen_flags: <defaults>
</compile_context>

<pallas_src>
import jax
import jax.numpy as jnp
import numpy as np
from jax.experimental import pallas as pl
from jax.experimental.pallas import tpu as pltpu


def _make_kernel(H, TH, W):
    """Kernel closure over static sizes. W is the (lane-padded) width."""
    partial_rows = (H % TH) != 0

    def kernel(fuse_ref, xc_ref, xt_ref, xb_ref, out_ref):
        # fuse_ref: (3,) f32 in SMEM (learnable fuse weights 0.6/0.3/0.1)
        # xc_ref  : (1, TH, W) current row tile
        # xt_ref  : (1, 8, W) slab whose LAST row is the row just above the tile
        # xb_ref  : (1, 8, W) slab whose FIRST row is the row just below the tile
        # out_ref : (1, TH, W)
        t = pl.program_id(1)
        nt = pl.num_programs(1)

        # One narrow column iota + one narrow row iota; every mask below is a
        # broadcast of these two (avoids repeated full-tile iota/compare passes).
        ci = jax.lax.broadcasted_iota(jnp.int32, (1, W), 1)    # (1, W)
        ri = jax.lax.broadcasted_iota(jnp.int32, (TH, 1), 0)   # (TH, 1)
        col_first, col_last = ci == 0, ci == W - 1
        row_first, row_last = ri == 0, ri == TH - 1
        col_odd, col_b2 = (ci & 1) == 1, (ci & 2) != 0
        row_odd, row_b2 = (ri & 1) == 1, (ri & 2) != 0

        xc = xc_ref[0].astype(jnp.float32)                     # (TH, W)
        if partial_rows:  # last tile sticks out past H: zero the garbage rows
            xc = jnp.where(ri + t * TH < H, xc, 0.0)
        top = xt_ref[0].astype(jnp.float32)[7:8, :]            # row above tile (1, W)
        bot = xb_ref[0].astype(jnp.float32)[0:1, :]            # row below tile (1, W)
        top = jnp.where(t == 0, 0.0, top)                      # image-top zero pad
        bot = jnp.where(t == nt - 1, 0.0, bot)                 # image-bottom zero pad

        def hsum3(x):  # out[:, j] = x[:, j-1] + x[:, j] + x[:, j+1], zero boundary
            left = jnp.where(col_first, 0.0, pltpu.roll(x, 1, axis=1))
            right = jnp.where(col_last, 0.0, pltpu.roll(x, W - 1, axis=1))
            return left + x + right

        hs_c, hs_t, hs_b = hsum3(xc), hsum3(top), hsum3(bot)

        up = jnp.where(row_first, hs_t, pltpu.roll(hs_c, 1, axis=0))       # hs[i-1]
        dn = jnp.where(row_last, hs_b, pltpu.roll(hs_c, TH - 1, axis=0))   # hs[i+1]
        box = up + hs_c + dn

        # laplacian = 8*c - neighbors = 9*c - box3x3; clamp(min=0) then >0.1 == raw >0.1
        m = jnp.where(9.0 * xc - box > 0.1, 1.0, 0.0)          # stride-1 boundary map

        # strided conv + nearest-up == m[i - i%f, j - j%f]; parity select + roll.
        # Accumulate `fused` incrementally to keep fewer full-tile temporaries live.
        fused = fuse_ref[0] * m
        a = jnp.where(row_odd, pltpu.roll(m, 1, axis=0), m)
        m2 = jnp.where(col_odd, pltpu.roll(a, 1, axis=1), a)       # m[i-i%2, j-j%2]
        fused = fused + fuse_ref[1] * m2
        b = jnp.where(row_b2, pltpu.roll(m2, 2, axis=0), m2)
        m4 = jnp.where(col_b2, pltpu.roll(b, 2, axis=1), b)        # m[i-i%4, j-j%4]
        fused = fused + fuse_ref[2] * m4

        out_ref[0] = jnp.where(fused > 0.1, 1.0, 0.0).astype(out_ref.dtype)

    return kernel


def edge_mask2(gtmasks, fuse_w, tile_h=None, out_dtype=jnp.float32,
               tile_budget_bytes=1 << 20):
    """gtmasks: (N, H, W), any numeric dtype (kept narrow in HBM, cast in-kernel).
    fuse_w: (3,) f32.  Returns out_dtype (N, H, W)."""
    N, H, W = gtmasks.shape
    assert H % 4 == 0 and W % 4 == 0, "H, W must be divisible by 4"
    assert H >= 8

    # Lane-dense output: pad W to a multiple of 128 (zero cols don't change the
    # result on the original columns), crop after.  Skipped when already aligned.
    Wp = -(-W // 128) * 128
    x = gtmasks if Wp == W else jnp.pad(gtmasks, ((0, 0), (0, 0), (0, Wp - W)))

    if tile_h is None:
        th = max(8, (tile_budget_bytes // (Wp * 4)) // 8 * 8)   # ~1 MiB f32 per tile
        tile_h = max(8, min(th, (H // 8) * 8))
    assert tile_h % 8 == 0, "tile_h must be a multiple of 8 (keeps tile origin %4==0)"
    nt = pl.cdiv(H, tile_h)           # partial last tile handled by in-kernel masking
    th8 = tile_h // 8
    nhb = pl.cdiv(H, 8)               # halo slabs are indexed in 8-row blocks

    tile_bytes = tile_h * Wp * 4
    vmem_limit = int(min(48 * 1024 * 1024, max(32 * 1024 * 1024, 24 * tile_bytes)))

    out = pl.pallas_call(
        _make_kernel(H, tile_h, Wp),
        out_shape=jax.ShapeDtypeStruct((N, H, Wp), out_dtype),
        grid=(N, nt),
        in_specs=[
            pl.BlockSpec(memory_space=pltpu.MemorySpace.SMEM),          # fuse (3,)
            pl.BlockSpec((1, tile_h, Wp), lambda n, t: (n, t, 0)),      # row tile
            # 8-row halo slabs: last row of the slab above / first row of the slab
            # below the tile.  Image-boundary cases are zeroed in-kernel.
            pl.BlockSpec((1, 8, Wp),
                         lambda n, t: (n, jnp.maximum(t * th8 - 1, 0), 0)),
            pl.BlockSpec((1, 8, Wp),
                         lambda n, t: (n, jnp.minimum((t + 1) * th8, nhb - 1), 0)),
        ],
        out_specs=pl.BlockSpec((1, tile_h, Wp), lambda n, t: (n, t, 0)),
        compiler_params=pltpu.CompilerParams(
            dimension_semantics=("parallel", "parallel"),
            vmem_limit_bytes=vmem_limit),
    )(fuse_w, x, x, x)

    return out if Wp == W else out[:, :, :W]


def edge_mask2_ref(gtmasks, lap_flat, fuse_w):
    """Pure-JAX reference mirroring the PyTorch forward (for validation)."""
    lap = lap_flat.reshape(1, 1, 3, 3)
    x = gtmasks.astype(jnp.float32)[:, None]  # NCHW

    def conv(inp, stride):
        return jax.lax.conv_general_dilated(
            inp, lap, window_strides=(stride, stride), padding=((1, 1), (1, 1)))

    N, _, H, W = x.shape
    bt = jnp.clip(conv(x, 1), 0)
    bt = jnp.where(bt > 0.1, 1.0, 0.0)
    b2 = jnp.clip(conv(x, 2), 0)
    b4 = jnp.clip(conv(x, 4), 0)

    def up_nearest(a):  # F.interpolate(..., mode='nearest') back to (H, W)
        h, w = a.shape[2], a.shape[3]
        ri = jnp.arange(H) * h // H
        ci = jnp.arange(W) * w // W
        return a[:, :, ri][:, :, :, ci]

    b2u = jnp.where(up_nearest(b2) > 0.1, 1.0, 0.0)
    b4u = jnp.where(up_nearest(b4) > 0.1, 1.0, 0.0)
    fused = fuse_w[0] * bt + fuse_w[1] * b2u + fuse_w[2] * b4u
    return jnp.where(fused > 0.1, 1.0, 0.0)[:, 0]


if __name__ == "__main__":
    # Fixed module "parameters" (exactly the values from EdgeMask2.__init__).
    lap_flat = jnp.array([-1, -1, -1, -1, 8, -1, -1, -1, -1], dtype=jnp.float32)
    fuse_w = jnp.array([6.0 / 10, 3.0 / 10, 1.0 / 10], dtype=jnp.float32)

    key = jax.random.PRNGKey(0)
    cases = [
        ((2, 16, 16), 8, jnp.float32),      # 2 row tiles, W padded to 128
        ((2, 24, 128), None, jnp.int32),    # lane-aligned W, auto tile, int input
        ((1, 12, 16), None, jnp.float32),   # H % 8 != 0 -> partial last tile (row mask)
        ((2, 32, 32), 8, jnp.uint8),        # narrow HBM input dtype, 4 row tiles
        ((1, 20, 160), None, jnp.float32),  # W pad 160->256 and partial last tile
    ]
    for shape, th, dt in cases:
        key, sub = jax.random.split(key)
        gt = jax.random.randint(sub, shape, 0, 3).astype(dt)   # segmentation class ids
        out = jax.block_until_ready(edge_mask2(gt, fuse_w, tile_h=th))
        ref = edge_mask2_ref(gt, lap_flat, fuse_w)
        np.testing.assert_allclose(np.asarray(out), np.asarray(ref), atol=1e-5)

    print("KERNEL_OK")
</pallas_src>

<mosaic_0001>
module attributes {stable_mosaic.version = 11 : i64} {
  func.func @kernel(%arg0: i32, %arg1: i32, %arg2: memref<3xf32, #tpu.memory_space<smem>>, %arg3: memref<1x8x128xf32, #tpu.memory_space<vmem>>, %arg4: memref<1x8x128xf32, #tpu.memory_space<vmem>>, %arg5: memref<1x8x128xf32, #tpu.memory_space<vmem>>, %arg6: memref<1x8x128xf32, #tpu.memory_space<vmem>>) attributes {dimension_semantics = [#tpu.dimension_semantics<parallel>, #tpu.dimension_semantics<parallel>], iteration_bounds = array<i64: 2, 2>, scalar_prefetch = 0 : i64, scratch_operands = 0 : i64, tpu.core_type = #tpu.core_type<tc>, window_params = [{transform_indices = @transform_0, window_bounds = array<i64: 3>}, {transform_indices = @transform_1, window_bounds = array<i64: 1, 8, 128>}, {transform_indices = @transform_2, window_bounds = array<i64: 1, 8, 128>}, {transform_indices = @transform_3, window_bounds = array<i64: 1, 8, 128>}, {transform_indices = @transform_4, window_bounds = array<i64: 1, 8, 128>}]} {
    %0 = tpu.iota {dimensions = array<i32: 1>} : vector<1x128xi32>
    %1 = tpu.iota {dimensions = array<i32: 0>} : vector<8x1xi32>
    %c0_i32 = arith.constant 0 : i32
    %2 = vector.broadcast %c0_i32 : i32 to vector<1x128xi32>
    %3 = arith.cmpi eq, %0, %2 : vector<1x128xi32>
    %c127_i32 = arith.constant 127 : i32
    %4 = vector.broadcast %c127_i32 : i32 to vector<1x128xi32>
    %5 = arith.cmpi eq, %0, %4 : vector<1x128xi32>
    %c0_i32_0 = arith.constant 0 : i32
    %6 = vector.broadcast %c0_i32_0 : i32 to vector<8x1xi32>
    %7 = arith.cmpi eq, %1, %6 : vector<8x1xi32>
    %c7_i32 = arith.constant 7 : i32
    %8 = vector.broadcast %c7_i32 : i32 to vector<8x1xi32>
    %9 = arith.cmpi eq, %1, %8 : vector<8x1xi32>
    %c1_i32 = arith.constant 1 : i32
    %10 = vector.broadcast %c1_i32 : i32 to vector<1x128xi32>
    %11 = arith.andi %0, %10 : vector<1x128xi32>
    %c1_i32_1 = arith.constant 1 : i32
    %12 = vector.broadcast %c1_i32_1 : i32 to vector<1x128xi32>
    %13 = arith.cmpi eq, %11, %12 : vector<1x128xi32>
    %c2_i32 = arith.constant 2 : i32
    %14 = vector.broadcast %c2_i32 : i32 to vector<1x128xi32>
    %15 = arith.andi %0, %14 : vector<1x128xi32>
    %c0_i32_2 = arith.constant 0 : i32
    %16 = vector.broadcast %c0_i32_2 : i32 to vector<1x128xi32>
    %17 = arith.cmpi ne, %15, %16 : vector<1x128xi32>
    %c1_i32_3 = arith.constant 1 : i32
    %18 = vector.broadcast %c1_i32_3 : i32 to vector<8x1xi32>
    %19 = arith.andi %1, %18 : vector<8x1xi32>
    %c1_i32_4 = arith.constant 1 : i32
    %20 = vector.broadcast %c1_i32_4 : i32 to vector<8x1xi32>
    %21 = arith.cmpi eq, %19, %20 : vector<8x1xi32>
    %c2_i32_5 = arith.constant 2 : i32
    %22 = vector.broadcast %c2_i32_5 : i32 to vector<8x1xi32>
    %23 = arith.andi %1, %22 : vector<8x1xi32>
    %c0_i32_6 = arith.constant 0 : i32
    %24 = vector.broadcast %c0_i32_6 : i32 to vector<8x1xi32>
    %25 = arith.cmpi ne, %23, %24 : vector<8x1xi32>
    %c0 = arith.constant 0 : index
    %c0_7 = arith.constant 0 : index
    %c0_8 = arith.constant 0 : index
    %26 = vector.load %arg3[%c0, %c0_7, %c0_8] : memref<1x8x128xf32, #tpu.memory_space<vmem>>, vector<1x8x128xf32>
    %27 = vector.shape_cast %26 : vector<1x8x128xf32> to vector<8x128xf32>
    %c0_9 = arith.constant 0 : index
    %c0_10 = arith.constant 0 : index
    %c0_11 = arith.constant 0 : index
    %28 = vector.load %arg4[%c0_9, %c0_10, %c0_11] : memref<1x8x128xf32, #tpu.memory_space<vmem>>, vector<1x8x128xf32>
    %29 = vector.shape_cast %28 : vector<1x8x128xf32> to vector<8x128xf32>
    %30 = vector.extract_strided_slice %29 {offsets = [7, 0], sizes = [1, 128], strides = [1, 1]} : vector<8x128xf32> to vector<1x128xf32>
    %c0_12 = arith.constant 0 : index
    %c0_13 = arith.constant 0 : index
    %c0_14 = arith.constant 0 : index
    %31 = vector.load %arg5[%c0_12, %c0_13, %c0_14] : memref<1x8x128xf32, #tpu.memory_space<vmem>>, vector<1x8x128xf32>
    %32 = vector.shape_cast %31 : vector<1x8x128xf32> to vector<8x128xf32>
    %33 = vector.extract_strided_slice %32 {offsets = [0, 0], sizes = [1, 128], strides = [1, 1]} : vector<8x128xf32> to vector<1x128xf32>
    %c0_i32_15 = arith.constant 0 : i32
    %34 = arith.cmpi eq, %arg1, %c0_i32_15 : i32
    %cst = arith.constant 0.000000e+00 : f32
    %35 = vector.broadcast %cst : f32 to vector<1x128xf32>
    %36 = arith.select %34, %35, %30 : vector<1x128xf32>
    %c1_i32_16 = arith.constant 1 : i32
    %37 = arith.cmpi eq, %arg1, %c1_i32_16 : i32
    %cst_17 = arith.constant 0.000000e+00 : f32
    %38 = vector.broadcast %cst_17 : f32 to vector<1x128xf32>
    %39 = arith.select %37, %38, %33 : vector<1x128xf32>
    %c1_i32_18 = arith.constant 1 : i32
    %40 = tpu.dynamic_rotate %27 by %c1_i32_18 dim 1 : vector<8x128xf32>, i32 -> vector<8x128xf32>
    %cst_19 = arith.constant 0.000000e+00 : f32
    %41 = vector.shape_cast %3 : vector<1x128xi1> to vector<1x128xi1>
    %42 = vector.broadcast %41 : vector<1x128xi1> to vector<8x128xi1>
    %43 = vector.broadcast %cst_19 : f32 to vector<8x128xf32>
    %44 = arith.select %42, %43, %40 : vector<8x128xi1>, vector<8x128xf32>
    %c127_i32_20 = arith.constant 127 : i32
    %45 = tpu.dynamic_rotate %27 by %c127_i32_20 dim 1 : vector<8x128xf32>, i32 -> vector<8x128xf32>
    %cst_21 = arith.constant 0.000000e+00 : f32
    %46 = vector.shape_cast %5 : vector<1x128xi1> to vector<1x128xi1>
    %47 = vector.broadcast %46 : vector<1x128xi1> to vector<8x128xi1>
    %48 = vector.broadcast %cst_21 : f32 to vector<8x128xf32>
    %49 = arith.select %47, %48, %45 : vector<8x128xi1>, vector<8x128xf32>
    %50 = arith.addf %44, %27 : vector<8x128xf32>
    %51 = arith.addf %50, %49 : vector<8x128xf32>
    %c1_i32_22 = arith.constant 1 : i32
    %52 = tpu.dynamic_rotate %36 by %c1_i32_22 dim 1 : vector<1x128xf32>, i32 -> vector<1x128xf32>
    %cst_23 = arith.constant 0.000000e+00 : f32
    %53 = vector.broadcast %cst_23 : f32 to vector<1x128xf32>
    %54 = arith.select %3, %53, %52 : vector<1x128xi1>, vector<1x128xf32>
    %c127_i32_24 = arith.constant 127 : i32
    %55 = tpu.dynamic_rotate %36 by %c127_i32_24 dim 1 : vector<1x128xf32>, i32 -> vector<1x128xf32>
    %cst_25 = arith.constant 0.000000e+00 : f32
    %56 = vector.broadcast %cst_25 : f32 to vector<1x128xf32>
    %57 = arith.select %5, %56, %55 : vector<1x128xi1>, vector<1x128xf32>
    %58 = arith.addf %54, %36 : vector<1x128xf32>
    %59 = arith.addf %58, %57 : vector<1x128xf32>
    %c1_i32_26 = arith.constant 1 : i32
    %60 = tpu.dynamic_rotate %39 by %c1_i32_26 dim 1 : vector<1x128xf32>, i32 -> vector<1x128xf32>
    %cst_27 = arith.constant 0.000000e+00 : f32
    %61 = vector.broadcast %cst_27 : f32 to vector<1x128xf32>
    %62 = arith.select %3, %61, %60 : vector<1x128xi1>, vector<1x128xf32>
    %c127_i32_28 = arith.constant 127 : i32
    %63 = tpu.dynamic_rotate %39 by %c127_i32_28 dim 1 : vector<1x128xf32>, i32 -> vector<1x128xf32>
    %cst_29 = arith.constant 0.000000e+00 : f32
    %64 = vector.broadcast %cst_29 : f32 to vector<1x128xf32>
    %65 = arith.select %5, %64, %63 : vector<1x128xi1>, vector<1x128xf32>
    %66 = arith.addf %62, %39 : vector<1x128xf32>
    %67 = arith.addf %66, %65 : vector<1x128xf32>
    %c1_i32_30 = arith.constant 1 : i32
    %68 = tpu.dynamic_rotate %51 by %c1_i32_30 dim 0 : vector<8x128xf32>, i32 -> vector<8x128xf32>
    %69 = vector.shape_cast %7 : vector<8x1xi1> to vector<8x1xi1>
    %70 = vector.broadcast %69 : vector<8x1xi1> to vector<8x128xi1>
    %71 = vector.shape_cast %59 : vector<1x128xf32> to vector<1x128xf32>
    %72 = vector.broadcast %71 : vector<1x128xf32> to vector<8x128xf32>
    %73 = arith.select %70, %72, %68 : vector<8x128xi1>, vector<8x128xf32>
    %c7_i32_31 = arith.constant 7 : i32
    %74 = tpu.dynamic_rotate %51 by %c7_i32_31 dim 0 : vector<8x128xf32>, i32 -> vector<8x128xf32>
    %75 = vector.shape_cast %9 : vector<8x1xi1> to vector<8x1xi1>
    %76 = vector.broadcast %75 : vector<8x1xi1> to vector<8x128xi1>
    %77 = vector.shape_cast %67 : vector<1x128xf32> to vector<1x128xf32>
    %78 = vector.broadcast %77 : vector<1x128xf32> to vector<8x128xf32>
    %79 = arith.select %76, %78, %74 : vector<8x128xi1>, vector<8x128xf32>
    %80 = arith.addf %73, %51 : vector<8x128xf32>
    %81 = arith.addf %80, %79 : vector<8x128xf32>
    %cst_32 = arith.constant 9.000000e+00 : f32
    %82 = vector.broadcast %cst_32 : f32 to vector<8x128xf32>
    %83 = arith.mulf %82, %27 : vector<8x128xf32>
    %84 = arith.subf %83, %81 : vector<8x128xf32>
    %cst_33 = arith.constant 1.000000e-01 : f32
    %85 = vector.broadcast %cst_33 : f32 to vector<8x128xf32>
    %86 = arith.cmpf ogt, %84, %85 : vector<8x128xf32>
    %cst_34 = arith.constant 1.000000e+00 : f32
    %cst_35 = arith.constant 0.000000e+00 : f32
    %87 = vector.broadcast %cst_34 : f32 to vector<8x128xf32>
    %88 = vector.broadcast %cst_35 : f32 to vector<8x128xf32>
    %89 = arith.select %86, %87, %88 : vector<8x128xi1>, vector<8x128xf32>
    %c0_36 = arith.constant 0 : index
    %90 = memref.load %arg2[%c0_36] : memref<3xf32, #tpu.memory_space<smem>>
    %91 = vector.broadcast %90 : f32 to vector<8x128xf32>
    %92 = arith.mulf %91, %89 : vector<8x128xf32>
    %c1_i32_37 = arith.constant 1 : i32
    %93 = tpu.dynamic_rotate %89 by %c1_i32_37 dim 0 : vector<8x128xf32>, i32 -> vector<8x128xf32>
    %94 = vector.shape_cast %21 : vector<8x1xi1> to vector<8x1xi1>
    %95 = vector.broadcast %94 : vector<8x1xi1> to vector<8x128xi1>
    %96 = arith.select %95, %93, %89 : vector<8x128xi1>, vector<8x128xf32>
    %c1_i32_38 = arith.constant 1 : i32
    %97 = tpu.dynamic_rotate %96 by %c1_i32_38 dim 1 : vector<8x128xf32>, i32 -> vector<8x128xf32>
    %98 = vector.shape_cast %13 : vector<1x128xi1> to vector<1x128xi1>
    %99 = vector.broadcast %98 : vector<1x128xi1> to vector<8x128xi1>
    %100 = arith.select %99, %97, %96 : vector<8x128xi1>, vector<8x128xf32>
    %c1 = arith.constant 1 : index
    %101 = memref.load %arg2[%c1] : memref<3xf32, #tpu.memory_space<smem>>
    %102 = vector.broadcast %101 : f32 to vector<8x128xf32>
    %103 = arith.mulf %102, %100 : vector<8x128xf32>
    %104 = arith.addf %92, %103 : vector<8x128xf32>
    %c2_i32_39 = arith.constant 2 : i32
    %105 = tpu.dynamic_rotate %100 by %c2_i32_39 dim 0 : vector<8x128xf32>, i32 -> vector<8x128xf32>
    %106 = vector.shape_cast %25 : vector<8x1xi1> to vector<8x1xi1>
    %107 = vector.broadcast %106 : vector<8x1xi1> to vector<8x128xi1>
    %108 = arith.select %107, %105, %100 : vector<8x128xi1>, vector<8x128xf32>
    %c2_i32_40 = arith.constant 2 : i32
    %109 = tpu.dynamic_rotate %108 by %c2_i32_40 dim 1 : vector<8x128xf32>, i32 -> vector<8x128xf32>
    %110 = vector.shape_cast %17 : vector<1x128xi1> to vector<1x128xi1>
    %111 = vector.broadcast %110 : vector<1x128xi1> to vector<8x128xi1>
    %112 = arith.select %111, %109, %108 : vector<8x128xi1>, vector<8x128xf32>
    %c2 = arith.constant 2 : index
    %113 = memref.load %arg2[%c2] : memref<3xf32, #tpu.memory_space<smem>>
    %114 = vector.broadcast %113 : f32 to vector<8x128xf32>
    %115 = arith.mulf %114, %112 : vector<8x128xf32>
    %116 = arith.addf %104, %115 : vector<8x128xf32>
    %cst_41 = arith.constant 1.000000e-01 : f32
    %117 = vector.broadcast %cst_41 : f32 to vector<8x128xf32>
    %118 = arith.cmpf ogt, %116, %117 : vector<8x128xf32>
    %cst_42 = arith.constant 1.000000e+00 : f32
    %cst_43 = arith.constant 0.000000e+00 : f32
    %119 = vector.broadcast %cst_42 : f32 to vector<8x128xf32>
    %120 = vector.broadcast %cst_43 : f32 to vector<8x128xf32>
    %121 = arith.select %118, %119, %120 : vector<8x128xi1>, vector<8x128xf32>
    %c0_44 = arith.constant 0 : index
    %c0_45 = arith.constant 0 : index
    %c0_46 = arith.constant 0 : index
    %122 = vector.load %arg6[%c0_44, %c0_45, %c0_46] : memref<1x8x128xf32, #tpu.memory_space<vmem>>, vector<1x8x128xf32>
    %123 = vector.shape_cast %122 : vector<1x8x128xf32> to vector<8x128xf32>
    %124 = vector.shape_cast %121 : vector<8x128xf32> to vector<1x8x128xf32>
    tpu.vector_store %arg6[%c0_44, %c0_45, %c0_46], %124 {strides = array<i32>} : memref<1x8x128xf32, #tpu.memory_space<vmem>>, vector<1x8x128xf32>,
    return
  }
  func.func @transform_0(%arg0: i32, %arg1: i32) -> i32 {
    %c0_i32 = arith.constant 0 : i32
    %c0_i32_0 = arith.constant 0 : i32
    return %c0_i32 : i32
  }
  func.func @transform_1(%arg0: i32, %arg1: i32) -> (i32, i32, i32) {
    %c0_i32 = arith.constant 0 : i32
    %c0_i32_0 = arith.constant 0 : i32
    return %arg0, %arg1, %c0_i32 : i32, i32, i32
  }
  func.func @transform_2(%arg0: i32, %arg1: i32) -> (i32, i32, i32) {
    %c1_i32 = arith.constant 1 : i32
    %0 = arith.muli %arg1, %c1_i32 : i32
    %c1_i32_0 = arith.constant 1 : i32
    %1 = arith.subi %0, %c1_i32_0 : i32
    %c0_i32 = arith.constant 0 : i32
    %2 = arith.maxsi %1, %c0_i32 : i32
    %c0_i32_1 = arith.constant 0 : i32
    %c0_i32_2 = arith.constant 0 : i32
    return %arg0, %2, %c0_i32_1 : i32, i32, i32
  }
  func.func @transform_3(%arg0: i32, %arg1: i32) -> (i32, i32, i32) {
    %c1_i32 = arith.constant 1 : i32
    %0 = arith.addi %arg1, %c1_i32 : i32
    %c1_i32_0 = arith.constant 1 : i32
    %1 = arith.muli %0, %c1_i32_0 : i32
    %c1_i32_1 = arith.constant 1 : i32
    %2 = arith.minsi %1, %c1_i32_1 : i32
    %c0_i32 = arith.constant 0 : i32
    %c0_i32_2 = arith.constant 0 : i32
    return %arg0, %2, %c0_i32 : i32, i32, i32
  }
  func.func @transform_4(%arg0: i32, %arg1: i32) -> (i32, i32, i32) {
    %c0_i32 = arith.constant 0 : i32
    %c0_i32_0 = arith.constant 0 : i32
    return %arg0, %arg1, %c0_i32 : i32, i32, i32
  }
}

</mosaic_0001>

<llo_original>
// kernel: tpu_custom_call.1
$region0: #{tpu_custom_call.1}
  #allocation0 [shape = 'u32[]', space=smem, size = 0x4, offset = 0x4, fixed_abs, tag = 'smem constant byte address 0x4 - core index']
  #allocation1 [shape = 'u32[72,128]{1,0:T(1,128)}', space=vmem, size = 0x9000, scoped, tag = 'internal scratch']
  %s0 = inlined_call_operand.hbm [shape: f32[3], index: 0, kind: input, shape index: {}]
  %s1 = inlined_call_operand.hbm [shape: f32[2,16,128], index: 1, kind: input, shape index: {}]
  %s2 = inlined_call_operand.hbm [shape: f32[2,16,128], index: 2, kind: input, shape index: {}]
  %s3 = inlined_call_operand.hbm [shape: f32[2,16,128], index: 3, kind: input, shape index: {}]
  %s4 = inlined_call_operand.hbm [shape: f32[2,16,128], index: 4, kind: output, shape index: {}]
  %s5 = sld [smem:[#allocation0]]
  $region65: #{tpu_custom_call.1} parent=0
    _
  %s7 = ssub.s32 1, %s5
  %s8 = scalar_select 0, %s7, %s5
  $region1: #{tpu_custom_call.1} parent=0
    #allocation2 [shape = 'u8[512]{0}', space=smem, size = 0x200, scoped, tag = 'input window, operand 0, single buffered']
    #allocation3 [shape = 's32[2]{0}', space=sflag, size = 0x8, scoped, tag = 'scoped memory for tpu_custom_call.1']
    #allocation4 [shape = 's32[2]{0}', space=sflag, size = 0x8, scoped, tag = 'scoped memory for tpu_custom_call.1']
    #allocation5 [shape = 's32[2]{0}', space=sflag, size = 0x8, scoped, tag = 'scoped memory for tpu_custom_call.1']
    #allocation6 [shape = 'u8[8192]{0}', space=vmem, size = 0x2000, scoped, tag = 'input window, operand 1']
    #allocation7 [shape = 'u8[8192]{0}', space=vmem, size = 0x2000, scoped, tag = 'input window, operand 2']
    #allocation8 [shape = 's32[2]{0}', space=sflag, size = 0x8, scoped, tag = 'scoped memory for tpu_custom_call.1']
    #allocation9 [shape = 'u8[8192]{0}', space=vmem, size = 0x2000, scoped, tag = 'input window, operand 3']
    #allocation10 [shape = 'u8[8192]{0}', space=vmem, size = 0x2000, scoped, tag = 'output window, operand 0']
    %9 = vsyncpa [#allocation5], 0
    %10 = vsyncpa [#allocation3], 0
    %s11 = scalar_lea.sflag [#allocation3], 1
    %12 = vsyncpa %s11, 0
    %13 = vsyncpa [#allocation8], 0
    %s14 = scalar_lea.sflag [#allocation8], 1
    %15 = vsyncpa %s14, 0
    %16 = vsyncpa [#allocation4], 0
    %s17 = scalar_lea.sflag [#allocation4], 1
    %18 = vsyncpa %s17, 0
    loop: start=0, step=1, limit=6
    $region2: #{tpu_custom_call.1} parent=1 // loop_pre_header
      _
    $region3: #{tpu_custom_call.1} parent=1 // loop_header
      %s20 = sphi 0, %s24
      %p21 = scmp.ge.s32.totalorder %s20, 6
      %s27 = sphi 0, %s39
      %s28 = sphi 0, %s35
      %s29 = sphi 0, %s27
      %s30 = sphi 0, %s28
      %s31 = sphi 0, %s29
      %s32 = sphi 0, %s30
      %s40 = sphi 0, %s40
      %s42 = sphi 0, %s40
      %s43 = sphi 0, %s42
      %s57 = sphi 0, %s43
      %s65 = sphi 0, %s67
      %s68 = sphi 0, %s65
      %s69 = sphi 0, %s68
      %s85 = sphi 0, %s69
      %s99 = sphi 0, %s101
      %s102 = sphi 0, %s99
      %s103 = sphi 0, %s102
      %s119 = sphi 0, %s103
      %s133 = sphi 0, %s135
      %s136 = sphi 0, %s133
      %s137 = sphi 0, %s136
      %s153 = sphi 0, %s137
      %s161 = sphi 0, %s163
      %s164 = sphi 0, %s161
      %s165 = sphi 0, %s164
      %s181 = sphi 0, %s165
    $region4: #{tpu_custom_call.1} parent=1 // loop_header_branch
      %23 = sbr.rel (%p21) target = $region8
    $region5: #{tpu_custom_call.1} parent=1 // loop_body
      %s25 = ssub.s32 %s20, 1
      %s26 = ssub.s32 %s20, 2
      %s33 = sadd.s32 1, %s28
      %p34 = scmp.ge.s32.totalorder %s33, 2
      %s35 = scalar_select %p34, 0, %s33
      %s36 = sadd.s32 1, %s27
      %s37 = scalar_select %p34, %s36, %s27
      %p38 = scmp.ge.s32.totalorder %s37, 2
      %s39 = scalar_select %p38, 0, %s37
      %s41 = sadd.s32 %s40, 1
      %p44 = scmp.eq.s32.totalorder %s20, 3
      %p45 = scmp.ne.s32.totalorder %s40, %s42
      %p46 = scmp.eq.s32.totalorder %s20, 0
      %p47 = por %p45, %p46
      %p48 = scmp.ne.s32.totalorder %s40, %s42
      %p49 = scmp.eq.s32.totalorder %s25, 3
      %p50 = por %p48, %p49
      %p51 = scmp.ne.s32.totalorder %s42, %s43
      %p52 = scmp.eq.s32.totalorder %s25, 0
      %p53 = por %p51, %p52
      %p54 = scmp.ne.s32.totalorder %s42, %s43
      %p55 = scmp.eq.s32.totalorder %s26, 3
      %p56 = por %p54, %p55
      %p58 = scmp.ne.s32.totalorder %s43, %s57
      %p59 = scmp.eq.s32.totalorder %s26, 0
      %p60 = por %p58, %p59
      %s61 = ssub.s32 %s27, %s39
      %s62 = ssub.s32 %s28, %s35
      %s63 = sor.u32 %s61, %s62
      %p64 = scmp.eq.s32.totalorder %s63, 0
      %s66 = sadd.s32 %s65, 1
      %s67 = scalar_select %p64, %s65, %s66
      %p70 = pneg %p64
      %p71 = scmp.eq.s32.totalorder %s20, 3
      %p72 = por %p70, %p71
      %p73 = scmp.ne.s32.totalorder %s65, %s68
      %p74 = scmp.eq.s32.totalorder %s20, 0
      %p75 = por %p73, %p74
      %p76 = scmp.ne.s32.totalorder %s65, %s68
      %p77 = scmp.eq.s32.totalorder %s25, 3
      %p78 = por %p76, %p77
      %p79 = scmp.ne.s32.totalorder %s68, %s69
      %p80 = scmp.eq.s32.totalorder %s25, 0
      %p81 = por %p79, %p80
      %p82 = scmp.ne.s32.totalorder %s68, %s69
      %p83 = scmp.eq.s32.totalorder %s26, 3
      %p84 = por %p82, %p83
      %p86 = scmp.ne.s32.totalorder %s69, %s85
      %p87 = scmp.eq.s32.totalorder %s26, 0
      %p88 = por %p86, %p87
      %s89 = ssub.s32 %s28, 1
      %p90 = scmp.gt.s32.totalorder %s89, 0
      %s91 = scalar_select %p90, %s89, 0
      %s92 = ssub.s32 %s35, 1
      %p93 = scmp.gt.s32.totalorder %s92, 0
      %s94 = scalar_select %p93, %s92, 0
      %s95 = ssub.s32 %s27, %s39
      %s96 = ssub.s32 %s91, %s94
      %s97 = sor.u32 %s95, %s96
      %p98 = scmp.eq.s32.totalorder %s97, 0
      %s100 = sadd.s32 %s99, 1
      %s101 = scalar_select %p98, %s99, %s100
      %p104 = pneg %p98
      %p105 = scmp.eq.s32.totalorder %s20, 3
      %p106 = por %p104, %p105
      %p107 = scmp.ne.s32.totalorder %s99, %s102
      %p108 = scmp.eq.s32.totalorder %s20, 0
      %p109 = por %p107, %p108
      %p110 = scmp.ne.s32.totalorder %s99, %s102
      %p111 = scmp.eq.s32.totalorder %s25, 3
      %p112 = por %p110, %p111
      %p113 = scmp.ne.s32.totalorder %s102, %s103
      %p114 = scmp.eq.s32.totalorder %s25, 0
      %p115 = por %p113, %p114
      %p116 = scmp.ne.s32.totalorder %s102, %s103
      %p117 = scmp.eq.s32.totalorder %s26, 3
      %p118 = por %p116, %p117
      %p120 = scmp.ne.s32.totalorder %s103, %s119
      %p121 = scmp.eq.s32.totalorder %s26, 0
      %p122 = por %p120, %p121
      %s123 = sadd.s32 %s28, 1
      %p124 = scmp.lt.s32.totalorder %s123, 1
      %s125 = scalar_select %p124, %s123, 1
      %s126 = sadd.s32 %s35, 1
      %p127 = scmp.lt.s32.totalorder %s126, 1
      %s128 = scalar_select %p127, %s126, 1
      %s129 = ssub.s32 %s27, %s39
      %s130 = ssub.s32 %s125, %s128
      %s131 = sor.u32 %s129, %s130
      %p132 = scmp.eq.s32.totalorder %s131, 0
      %s134 = sadd.s32 %s133, 1
      %s135 = scalar_select %p132, %s133, %s134
      %p138 = pneg %p132
      %p139 = scmp.eq.s32.totalorder %s20, 3
      %p140 = por %p138, %p139
      %p141 = scmp.ne.s32.totalorder %s133, %s136
      %p142 = scmp.eq.s32.totalorder %s20, 0
      %p143 = por %p141, %p142
      %p144 = scmp.ne.s32.totalorder %s133, %s136
      %p145 = scmp.eq.s32.totalorder %s25, 3
      %p146 = por %p144, %p145
      %p147 = scmp.ne.s32.totalorder %s136, %s137
      %p148 = scmp.eq.s32.totalorder %s25, 0
      %p149 = por %p147, %p148
      %p150 = scmp.ne.s32.totalorder %s136, %s137
      %p151 = scmp.eq.s32.totalorder %s26, 3
      %p152 = por %p150, %p151
      %p154 = scmp.ne.s32.totalorder %s137, %s153
      %p155 = scmp.eq.s32.totalorder %s26, 0
      %p156 = por %p154, %p155
      %s157 = ssub.s32 %s27, %s39
      %s158 = ssub.s32 %s28, %s35
      %s159 = sor.u32 %s157, %s158
      %p160 = scmp.eq.s32.totalorder %s159, 0
      %s162 = sadd.s32 %s161, 1
      %s163 = scalar_select %p160, %s161, %s162
      %p166 = pneg %p160
      %p167 = scmp.eq.s32.totalorder %s20, 3
      %p168 = por %p166, %p167
      %p169 = scmp.ne.s32.totalorder %s161, %s164
      %p170 = scmp.eq.s32.totalorder %s20, 0
      %p171 = por %p169, %p170
      %p172 = scmp.ne.s32.totalorder %s161, %s164
      %p173 = scmp.eq.s32.totalorder %s25, 3
      %p174 = por %p172, %p173
      %p175 = scmp.ne.s32.totalorder %s164, %s165
      %p176 = scmp.eq.s32.totalorder %s25, 0
      %p177 = por %p175, %p176
      %p178 = scmp.ne.s32.totalorder %s164, %s165
      %p179 = scmp.eq.s32.totalorder %s26, 3
      %p180 = por %p178, %p179
      %p182 = scmp.ne.s32.totalorder %s165, %s181
      %p183 = scmp.eq.s32.totalorder %s26, 0
      %p184 = por %p182, %p183
      %p185 = scmp.le.s32.totalorder 1, %s20
      %p186 = scmp.lt.s32.totalorder %s20, 5
      %p187 = pnand %p185, %p186
      %p188 = pneg %p187
      // Predicated region
      $region9: #{tpu_custom_call.1} parent=5 // pred_check
        _
      $region10: #{tpu_custom_call.1} parent=5 // pred_check_branch
        %190 = sbr.rel (%p187) target = $region12
      $region11: #{tpu_custom_call.1} parent=5 // pred_region
        %s191 = ssub.s32 %s20, 1
        // Predicated region
        $region13: #{tpu_custom_call.1} parent=11 // pred_check
          %p192 = pneg %p53
        $region14: #{tpu_custom_call.1} parent=11 // pred_check_branch
          %194 = sbr.rel (%p192) target = $region16
        $region15: #{tpu_custom_call.1} parent=11 // pred_region
          %196 = vsyncadd [#allocation5], 0
          %s198 = sshll.u32 %s0, 4
          %s199 = int_to_ptr.hbm [resolvable:$true] %s198
          %201 = dma.hbm_to_smem %s199, 16, [#allocation2], [#allocation5]
        $region16: #{tpu_custom_call.1} parent=11 // pred_fallthru
          _
      $region12: #{tpu_custom_call.1} parent=5 // pred_fallthru
        _
      %p202 = scmp.lt.s32.totalorder %s20, 4
      // Predicated region
      $region17: #{tpu_custom_call.1} parent=5 // pred_check
        %p203 = pneg %p202
      $region18: #{tpu_custom_call.1} parent=5 // pred_check_branch
        %205 = sbr.rel (%p203) target = $region20
      $region19: #{tpu_custom_call.1} parent=5 // pred_region
        // Predicated region
        $region21: #{tpu_custom_call.1} parent=19 // pred_check
          %p206 = pneg %p75
        $region22: #{tpu_custom_call.1} parent=19 // pred_check_branch
          %208 = sbr.rel (%p206) target = $region24
        $region23: #{tpu_custom_call.1} parent=19 // pred_region
          %s209 = sand.u32 %s65, 1
          %s210 = scalar_lea.sflag [#allocation3], %s209
          %s211 = sand.u32 %s65, 1
          %s212 = smul.addr %s211, 8
          %s213 = scalar_lea.vmem [#allocation6], %s212
          %215 = vsyncadd %s210, 0
          %s216 = smul.addr %s27, 2
          %s217 = sadd.s32 %s28, %s216
          %s218 = smul.addr %s217, 8
          %s219 = scalar_lea.hbm %s1, %s218
          %s221 = sshll.u32 %s219, 4
          %s222 = int_to_ptr.hbm [resolvable:$true] %s221
          %s223 = sshll.u32 %s213, 4
          %s224 = int_to_ptr.vmem [resolvable:$true] %s223
          %226 = dma.hbm_to_vmem [thread:$0]  %s222, 128, %s224, %s210
        $region24: #{tpu_custom_call.1} parent=19 // pred_fallthru
          _
        // Predicated region
        $region25: #{tpu_custom_call.1} parent=19 // pred_check
          %p227 = pneg %p109
        $region26: #{tpu_custom_call.1} parent=19 // pred_check_branch
          %229 = sbr.rel (%p227) target = $region28
        $region27: #{tpu_custom_call.1} parent=19 // pred_region
          %s230 = sand.u32 %s20, 1
          %s231 = scalar_lea.sflag [#allocation8], %s230
          %s232 = sand.u32 %s99, 1
          %s233 = smul.addr %s232, 8
          %s234 = scalar_lea.vmem [#allocation7], %s233
          %s235 = ssub.s32 %s28, 1
          %p236 = scmp.gt.s32.totalorder %s235, 0
          %s237 = scalar_select %p236, %s235, 0
          %239 = vsyncadd %s231, 0
          %s240 = smul.addr %s27, 2
          %s241 = sadd.s32 %s237, %s240
          %s242 = smul.addr %s241, 8
          %s243 = scalar_lea.hbm %s2, %s242
          %s245 = sshll.u32 %s243, 4
          %s246 = int_to_ptr.hbm [resolvable:$true] %s245
          %s247 = sshll.u32 %s234, 4
          %s248 = int_to_ptr.vmem [resolvable:$true] %s247
          %250 = dma.hbm_to_vmem [thread:$0]  %s246, 128, %s248, %s231
        $region28: #{tpu_custom_call.1} parent=19 // pred_fallthru
          _
        // Predicated region
        $region29: #{tpu_custom_call.1} parent=19 // pred_check
          %p251 = pneg %p143
        $region30: #{tpu_custom_call.1} parent=19 // pred_check_branch
          %253 = sbr.rel (%p251) target = $region32
        $region31: #{tpu_custom_call.1} parent=19 // pred_region
          %s254 = sand.u32 %s20, 1
          %s255 = scalar_lea.sflag [#allocation8], %s254
          %s256 = sand.u32 %s133, 1
          %s257 = smul.addr %s256, 8
          %s258 = scalar_lea.vmem [#allocation9], %s257
          %s259 = sadd.s32 %s28, 1
          %p260 = scmp.lt.s32.totalorder %s259, 1
          %s261 = scalar_select %p260, %s259, 1
          %263 = vsyncadd %s255, 0
          %s264 = smul.addr %s27, 2
          %s265 = sadd.s32 %s261, %s264
          %s266 = smul.addr %s265, 8
          %s267 = scalar_lea.hbm %s3, %s266
          %s269 = sshll.u32 %s267, 4
          %s270 = int_to_ptr.hbm [resolvable:$true] %s269
          %s271 = sshll.u32 %s258, 4
          %s272 = int_to_ptr.vmem [resolvable:$true] %s271
          %274 = dma.hbm_to_vmem [thread:$0]  %s270, 128, %s272, %s255
        $region32: #{tpu_custom_call.1} parent=19 // pred_fallthru
          _
      $region20: #{tpu_custom_call.1} parent=5 // pred_fallthru
        _
      %p275 = scmp.le.s32.totalorder 1, %s20
      %p276 = scmp.lt.s32.totalorder %s20, 5
      %p277 = pnand %p275, %p276
      %p278 = pneg %p277
      // Predicated region
      $region33: #{tpu_custom_call.1} parent=5 // pred_check
        _
      $region34: #{tpu_custom_call.1} parent=5 // pred_check_branch
        %280 = sbr.rel (%p277) target = $region36
      $region35: #{tpu_custom_call.1} parent=5 // pred_region
        %s281 = ssub.s32 %s20, 1
        // Predicated region
        $region37: #{tpu_custom_call.1} parent=35 // pred_check
          %p282 = pneg %p53
        $region38: #{tpu_custom_call.1} parent=35 // pred_check_branch
          %284 = sbr.rel (%p282) target = $region40
        $region39: #{tpu_custom_call.1} parent=35 // pred_region
          %286 = dma.done [#allocation5], 16
        $region40: #{tpu_custom_call.1} parent=35 // pred_fallthru
          _
        %s287 = sand.u32 %s68, 1
        %s288 = scalar_lea.sflag [#allocation3], %s287
        %s289 = sand.u32 %s68, 1
        %s290 = smul.addr %s289, 8
        %s291 = scalar_lea.vmem [#allocation6], %s290
        // Predicated region
        $region41: #{tpu_custom_call.1} parent=35 // pred_check
          %p292 = pneg %p81
        $region42: #{tpu_custom_call.1} parent=35 // pred_check_branch
          %294 = sbr.rel (%p292) target = $region44
        $region43: #{tpu_custom_call.1} parent=35 // pred_region
          %296 = dma.done %s288, 128
        $region44: #{tpu_custom_call.1} parent=35 // pred_fallthru
          _
        %s297 = sand.u32 %s25, 1
        %s298 = scalar_lea.sflag [#allocation8], %s297
        %s299 = sand.u32 %s102, 1
        %s300 = smul.addr %s299, 8
        %s301 = scalar_lea.vmem [#allocation7], %s300
        // Predicated region
        $region45: #{tpu_custom_call.1} parent=35 // pred_check
          %p302 = pneg %p115
        $region46: #{tpu_custom_call.1} parent=35 // pred_check_branch
          %304 = sbr.rel (%p302) target = $region48
        $region47: #{tpu_custom_call.1} parent=35 // pred_region
          %306 = dma.done %s298, 128
        $region48: #{tpu_custom_call.1} parent=35 // pred_fallthru
          _
        %s307 = sand.u32 %s25, 1
        %s308 = scalar_lea.sflag [#allocation8], %s307
        %s309 = sand.u32 %s136, 1
        %s310 = smul.addr %s309, 8
        %s311 = scalar_lea.vmem [#allocation9], %s310
        // Predicated region
        $region49: #{tpu_custom_call.1} parent=35 // pred_check
          %p312 = pneg %p149
        $region50: #{tpu_custom_call.1} parent=35 // pred_check_branch
          %314 = sbr.rel (%p312) target = $region52
        $region51: #{tpu_custom_call.1} parent=35 // pred_region
          %316 = dma.done %s308, 128
        $region52: #{tpu_custom_call.1} parent=35 // pred_fallthru
          _
        %317 = sfence
        %p318 = pneg %p53
        %p319 = pneg %p50
        %s320 = sand.u32 %s68, 1
        %s321 = scalar_lea.sflag [#allocation3], %s320
        %s322 = sand.u32 %s68, 1
        %s323 = smul.addr %s322, 8
        %s324 = scalar_lea.vmem [#allocation6], %s323
        %p325 = pneg %p81
        %p326 = pneg %p78
        %s327 = sand.u32 %s25, 1
        %s328 = scalar_lea.sflag [#allocation8], %s327
        %s329 = sand.u32 %s102, 1
        %s330 = smul.addr %s329, 8
        %s331 = scalar_lea.vmem [#allocation7], %s330
        %p332 = pneg %p115
        %p333 = pneg %p112
        %s334 = sand.u32 %s25, 1
        %s335 = scalar_lea.sflag [#allocation8], %s334
        %s336 = sand.u32 %s136, 1
        %s337 = smul.addr %s336, 8
        %s338 = scalar_lea.vmem [#allocation9], %s337
        %p339 = pneg %p149
        %p340 = pneg %p146
        %p341 = pneg %p177
        %p342 = pneg %p174
        %s343 = sand.u32 %s164, 1
        %s344 = scalar_lea.sflag [#allocation4], %s343
        %s345 = sand.u32 %s164, 1
        %s346 = smul.addr %s345, 8
        %s347 = scalar_lea.vmem [#allocation10], %s346
        %s348 = ssub.s32 %s30, 1
        %p349 = scmp.gt.s32.totalorder %s348, 0
        %s350 = scalar_select %p349, %s348, 0
        %s351 = sadd.s32 %s30, 1
        %p352 = scmp.lt.s32.totalorder %s351, 1
        %s353 = scalar_select %p352, %s351, 1
        %v354 = vlaneseq
        %v355 = vand.u32 %v354, 127
        %v356 = vlaneseq
        %v357 = vshrl.u32 %v356, 7
        %vm358 = vcmp.eq.s32.totalorder %v355, 0
        %vm359 = vcmp.eq.s32.totalorder %v355, 127
        %vm360 = vcmp.eq.s32.totalorder %v357, 0
        %vm361 = vcmp.eq.s32.totalorder %v357, 7
        %v362 = vand.u32 %v355, 1
        %vm363 = vcmp.eq.s32.totalorder %v362, 1
        %v364 = vand.u32 %v355, 2
        %vm365 = vcmp.ne.s32.totalorder %v364, 0
        %v366 = vand.u32 %v357, 1
        %vm367 = vcmp.eq.s32.totalorder %v366, 1
        %v368 = vand.u32 %v357, 2
        %vm369 = vcmp.ne.s32.totalorder %v368, 0
        %v370 = vld [vmem:[%s291] sm:$0xff]
        %v371 = vld [vmem:[%s301] sm:$0xff]
        %v372 = vld [vmem:[%s311] sm:$0xff]
        %p373 = scmp.eq.s32.totalorder %s30, 0
        %s374 = scalar_select %p373, 1, 0
        %v375 = vstv %s374
        %vm376 = vcmp.eq.s32.totalorder %v375, 1
        %v377 = vsel %vm376, 0.0, %v371
        %p378 = scmp.eq.s32.totalorder %s30, 1
        %s379 = scalar_select %p378, 1, 0
        %v380 = vstv %s379
        %vm381 = vcmp.eq.s32.totalorder %v380, 1
        %v382 = vsel %vm381, 0.0, %v372
        %383 = vrot.lane.b32.xlu0 %v370, 1
        %v384 = vpop.permute.xlu0 %383
        %v385 = vsel %vm358, 1, 0
        %vm386 = vcmp.eq.s32.totalorder %v385, 1
        %v387 = vsel %vm386, 0.0, %v384
        %388 = vrot.lane.b32.xlu0 %v370, 127
        %v389 = vpop.permute.xlu0 %388
        %v390 = vsel %vm359, 1, 0
        %vm391 = vcmp.eq.s32.totalorder %v390, 1
        %v392 = vsel %vm391, 0.0, %v389
        %v393 = vadd.f32 %v387, %v370
        %v394 = vadd.f32 %v393, %v392
        %v396 = vrot.slane %v377, 7
        %398 = vrot.lane.b32.xlu0 %v396, 1
        %v399 = vpop.permute.xlu0 %398
        %v400 = vsel %vm358, 0.0, %v399
        %401 = vrot.lane.b32.xlu0 %v396, 127
        %v402 = vpop.permute.xlu0 %401
        %v403 = vsel %vm359, 0.0, %v402
        %v404 = vadd.f32 %v400, %v396
        %v405 = vadd.f32 %v404, %v403
        %406 = vrot.lane.b32.xlu0 %v382, 1
        %v407 = vpop.permute.xlu0 %406
        %v408 = vsel %vm358, 0.0, %v407
        %409 = vrot.lane.b32.xlu0 %v382, 127
        %v410 = vpop.permute.xlu0 %409
        %v411 = vsel %vm359, 0.0, %v410
        %v412 = vadd.f32 %v408, %v382
        %v413 = vadd.f32 %v412, %v411
        %v414 = vrot.slane %v394, 7
        %v415 = vsel %vm360, 1, 0
        %vm416 = vcmp.eq.s32.totalorder %v415, 1
        %v417 = vperm.slane %v405, 0
        %v418 = vsel %vm416, %v417, %v414
        %v419 = vrot.slane %v394, 1
        %v420 = vsel %vm361, 1, 0
        %vm421 = vcmp.eq.s32.totalorder %v420, 1
        %v422 = vperm.slane %v413, 0
        %v423 = vsel %vm421, %v422, %v419
        %v424 = vadd.f32 %v418, %v394
        %v425 = vadd.f32 %v424, %v423
        %v426 = vmul.f32 %v370, 9.0
        %v427 = vsub.f32 %v426, %v425
        %vm428 = vcmp.gt.f32.partialorder %v427, 0.1
        %v429 = vsel %vm428, 1.0, 0.0
        %s430 = sld [smem:[#allocation2]]
        %v431 = vstv %s430
        %v432 = vmul.f32 %v431, %v429
        %v433 = vrot.slane %v429, 7
        %v434 = vsel %vm367, 1, 0
        %vm435 = vcmp.eq.s32.totalorder %v434, 1
        %v436 = vsel %vm435, %v433, %v429
        %437 = vrot.lane.b32.xlu0 %v436, 1
        %v438 = vpop.permute.xlu0 %437
        %v439 = vsel %vm363, 1, 0
        %vm440 = vcmp.eq.s32.totalorder %v439, 1
        %v441 = vsel %vm440, %v438, %v436
        %s442 = sld [smem:[#allocation2 + $0x1]]
        %v443 = vstv %s442
        %v444 = vmul.f32 %v443, %v441
        %v445 = vadd.f32 %v432, %v444
        %v446 = vrot.slane %v441, 6
        %v447 = vsel %vm369, 1, 0
        %vm448 = vcmp.eq.s32.totalorder %v447, 1
        %v449 = vsel %vm448, %v446, %v441
        %450 = vrot.lane.b32.xlu0 %v449, 2
        %v451 = vpop.permute.xlu0 %450
        %v452 = vsel %vm365, 1, 0
        %vm453 = vcmp.eq.s32.totalorder %v452, 1
        %v454 = vsel %vm453, %v451, %v449
        %s455 = sld [smem:[#allocation2 + $0x2]]
        %v456 = vstv %s455
        %v457 = vmul.f32 %v456, %v454
        %v458 = vadd.f32 %v445, %v457
        %vm459 = vcmp.gt.f32.partialorder %v458, 0.1
        %v460 = vsel %vm459, 1.0, 0.0
        %461 = vst [vmem:[%s347] sm:$0xff] %v460
        %s462 = sand.u32 %s164, 1
        %s463 = scalar_lea.sflag [#allocation4], %s462
        %s464 = sand.u32 %s164, 1
        %s465 = smul.addr %s464, 8
        %s466 = scalar_lea.vmem [#allocation10], %s465
        // Predicated region
        $region53: #{tpu_custom_call.1} parent=35 // pred_check
          %p467 = pneg %p174
        $region54: #{tpu_custom_call.1} parent=35 // pred_check_branch
          %469 = sbr.rel (%p467) target = $region56
        $region55: #{tpu_custom_call.1} parent=35 // pred_region
          %471 = vsyncadd %s463, 0
          %s472 = smul.addr %s29, 2
          %s473 = sadd.s32 %s30, %s472
          %s474 = smul.addr %s473, 8
          %s475 = scalar_lea.hbm %s4, %s474
          %s477 = sshll.u32 %s466, 4
          %s478 = int_to_ptr.vmem [resolvable:$true] %s477
          %s479 = sshll.u32 %s475, 4
          %s480 = int_to_ptr.hbm [resolvable:$true] %s479
          %482 = dma.vmem_to_hbm [thread:$0]  %s478, 128, %s480, %s463
        $region56: #{tpu_custom_call.1} parent=35 // pred_fallthru
          _
      $region36: #{tpu_custom_call.1} parent=5 // pred_fallthru
        _
      %p483 = scmp.le.s32.totalorder 2, %s20
      // Predicated region
      $region57: #{tpu_custom_call.1} parent=5 // pred_check
        %p484 = pneg %p483
      $region58: #{tpu_custom_call.1} parent=5 // pred_check_branch
        %486 = sbr.rel (%p484) target = $region60
      $region59: #{tpu_custom_call.1} parent=5 // pred_region
        %s487 = ssub.s32 %s20, 2
        // Predicated region
        $region61: #{tpu_custom_call.1} parent=59 // pred_check
          %p488 = pneg %p180
        $region62: #{tpu_custom_call.1} parent=59 // pred_check_branch
          %490 = sbr.rel (%p488) target = $region64
        $region63: #{tpu_custom_call.1} parent=59 // pred_region
          %s491 = sand.u32 %s165, 1
          %s492 = scalar_lea.sflag [#allocation4], %s491
          %s493 = sand.u32 %s165, 1
          %s494 = smul.addr %s493, 8
          %s495 = scalar_lea.vmem [#allocation10], %s494
          %497 = dma.done %s492, 128
        $region64: #{tpu_custom_call.1} parent=59 // pred_fallthru
          _
      $region60: #{tpu_custom_call.1} parent=5 // pred_fallthru
        _
    $region6: #{tpu_custom_call.1} parent=1 // loop_footer
      %s24 = sadd.s32 1, %s20
    $region7: #{tpu_custom_call.1} parent=1 // loop_footer_branch
      %19 = sbr.rel target = $region3
    $region8: #{tpu_custom_call.1} parent=1 // loop_exit
      _
    %498 = vsyncpa [#allocation3], 1
    %s499 = scalar_lea.sflag [#allocation3], 1
    %500 = vsyncpa %s499, 1
    %501 = vsyncpa [#allocation8], 1
    %s502 = scalar_lea.sflag [#allocation8], 1
    %503 = vsyncpa %s502, 1
    %504 = vsyncpa [#allocation4], 1
    %s505 = scalar_lea.sflag [#allocation4], 1
    %506 = vsyncpa %s505, 1
    %507 = vsyncpa [#allocation5], 1
    %s508 = scalar_lea.sflag [#allocation5], 1
    %509 = vsyncpa %s508, 1

</llo_original>
